<compile_context>
chip_gen: v6e
topology: v6e:2x2x1
jax: 0.10.0
libtpu: 0.0.40
codegen_flags: <defaults>
</compile_context>

<pallas_src>
import math
from functools import partial

import jax
import jax.numpy as jnp
from jax.experimental import pallas as pl
from jax.experimental.pallas import tpu as pltpu

_LANE = 128


def _round_up(n: int, m: int) -> int:
    return ((n + m - 1) // m) * m


def _build_embedding(num_steps: int, dim: int) -> jnp.ndarray:
    """Matches DiffusionEmbedding._build_embedding (dim = embedding_dim / 2)."""
    steps = jnp.arange(num_steps, dtype=jnp.float32)[:, None]               # (T, 1)
    freqs = 10.0 ** (jnp.arange(dim, dtype=jnp.float32) / (dim - 1) * 4.0)  # (dim,)
    table = steps * freqs[None, :]                                          # (T, dim)
    return jnp.concatenate([jnp.sin(table), jnp.cos(table)], axis=1)        # (T, 2*dim)


def prepare_params(table, w1, b1, w2, b2, compute_dtype=jnp.float32):
    """One-time host-side prep: transpose PyTorch (out,in) weights to (in,out),
    zero-pad the feature dim to a multiple of 128 lanes, cast weights to the
    MXU compute dtype.  Table and biases stay f32."""
    d = w1.shape[0]
    dp = _round_up(d, _LANE)

    def pad2(a, rows, cols):
        return jnp.pad(a, ((0, rows - a.shape[0]), (0, cols - a.shape[1])))

    table_p = pad2(table.astype(jnp.float32), table.shape[0], dp)            # (T, Dp) f32
    w1_t = pad2(w1.T.astype(jnp.float32), dp, dp).astype(compute_dtype)      # (Dp, Dp)
    w2_t = pad2(w2.T.astype(jnp.float32), dp, dp).astype(compute_dtype)      # (Dp, Dp)
    b1_p = pad2(b1.reshape(1, -1).astype(jnp.float32), 1, dp)                # (1, Dp) f32
    b2_p = pad2(b2.reshape(1, -1).astype(jnp.float32), 1, dp)                # (1, Dp) f32
    return table_p, w1_t, b1_p, w2_t, b2_p


def _diffusion_embedding_kernel(step_ref, table_ref, w1_ref, b1_ref, w2_ref,
                                b2_ref, o_ref):
    """Fused: gather rows by step index, then Linear -> SiLU -> Linear -> SiLU."""
    batch = o_ref.shape[0]
    cdt = w1_ref.dtype  # compute dtype for MXU operands (f32 or bf16)

    # Row gather from SMEM step indices (batch is small & static -> unrolled).
    rows = [table_ref[pl.ds(step_ref[b], 1), :] for b in range(batch)]
    x = jnp.concatenate(rows, axis=0).astype(cdt)                            # (B, Dp)

    h = jnp.dot(x, w1_ref[...], preferred_element_type=jnp.float32) + b1_ref[...]
    h = h * jax.nn.sigmoid(h)                                                # SiLU (EUP)
    y = jnp.dot(h.astype(cdt), w2_ref[...],
                preferred_element_type=jnp.float32) + b2_ref[...]
    o_ref[...] = (y * jax.nn.sigmoid(y)).astype(o_ref.dtype)                 # SiLU


@partial(jax.jit, static_argnames=("out_dim",))
def diffusion_embedding_forward(diffusion_step, table_p, w1_t, b1, w2_t, b2,
                                *, out_dim):
    """diffusion_step:(B,) int32; padded params from prepare_params; returns (B, out_dim) f32."""
    batch = diffusion_step.shape[0]
    dp = table_p.shape[1]

    out_padded = pl.pallas_call(
        _diffusion_embedding_kernel,
        out_shape=jax.ShapeDtypeStruct((batch, dp), jnp.float32),
        in_specs=[
            pl.BlockSpec(memory_space=pltpu.MemorySpace.SMEM),   # step indices
            pl.BlockSpec(memory_space=pltpu.MemorySpace.VMEM),   # table  (T, Dp)
            pl.BlockSpec(memory_space=pltpu.MemorySpace.VMEM),   # w1^T   (Dp, Dp)
            pl.BlockSpec(memory_space=pltpu.MemorySpace.VMEM),   # b1     (1, Dp)
            pl.BlockSpec(memory_space=pltpu.MemorySpace.VMEM),   # w2^T   (Dp, Dp)
            pl.BlockSpec(memory_space=pltpu.MemorySpace.VMEM),   # b2     (1, Dp)
        ],
        out_specs=pl.BlockSpec(memory_space=pltpu.MemorySpace.VMEM),
    )(diffusion_step, table_p, w1_t, b1, w2_t, b2)

    return out_padded[:, :out_dim]


def _reference_forward(table, w1, b1, w2, b2, diffusion_step):
    """Pure-JAX reference with PyTorch-layout (out,in) weights."""
    x = table[diffusion_step]
    h = x @ w1.T + b1
    h = h * jax.nn.sigmoid(h)
    y = h @ w2.T + b2
    return y * jax.nn.sigmoid(y)


if __name__ == "__main__":
    num_steps = 50
    embedding_dim = 32
    batch = 8

    # Sinusoidal buffer: built ONCE (pure function of num_steps/embedding_dim).
    table = _build_embedding(num_steps, embedding_dim // 2)   # (50, 32)

    # Deterministic synthetic nn.Linear params in PyTorch (out, in) layout.
    key = jax.random.PRNGKey(0)
    k1, k2, k3, k4, k5 = jax.random.split(key, 5)
    scale = 1.0 / math.sqrt(embedding_dim)
    w1 = jax.random.uniform(k1, (embedding_dim, embedding_dim),
                            minval=-scale, maxval=scale, dtype=jnp.float32)
    b1 = jax.random.uniform(k2, (embedding_dim,),
                            minval=-scale, maxval=scale, dtype=jnp.float32)
    w2 = jax.random.uniform(k3, (embedding_dim, embedding_dim),
                            minval=-scale, maxval=scale, dtype=jnp.float32)
    b2 = jax.random.uniform(k4, (embedding_dim,),
                            minval=-scale, maxval=scale, dtype=jnp.float32)
    diffusion_step = jax.random.randint(k5, (batch,), 0, num_steps, dtype=jnp.int32)

    ref = _reference_forward(table, w1, b1, w2, b2, diffusion_step)

    # --- f32 operands (exact check) ---
    params_f32 = prepare_params(table, w1, b1, w2, b2, compute_dtype=jnp.float32)
    out = diffusion_embedding_forward(diffusion_step, *params_f32,
                                      out_dim=embedding_dim)
    out = jax.block_until_ready(out)
    assert out.shape == (batch, embedding_dim)
    assert jnp.allclose(out, ref, atol=1e-5, rtol=1e-5)

    # --- bf16 operands (MXU-native on v6e/v7x), f32 accumulation ---
    params_bf16 = prepare_params(table, w1, b1, w2, b2, compute_dtype=jnp.bfloat16)
    out_bf16 = jax.block_until_ready(
        diffusion_embedding_forward(diffusion_step, *params_bf16,
                                    out_dim=embedding_dim))
    assert out_bf16.shape == (batch, embedding_dim)
    assert jnp.allclose(out_bf16, ref, atol=5e-2, rtol=5e-2)

    print("KERNEL_OK")
</pallas_src>

<mosaic_0001>
module attributes {stable_mosaic.version = 11 : i64} {
  func.func @_diffusion_embedding_kernel(%arg0: memref<8xi32, #tpu.memory_space<smem>>, %arg1: memref<50x128xf32, #tpu.memory_space<vmem>>, %arg2: memref<128x128xf32, #tpu.memory_space<vmem>>, %arg3: memref<1x128xf32, #tpu.memory_space<vmem>>, %arg4: memref<128x128xf32, #tpu.memory_space<vmem>>, %arg5: memref<1x128xf32, #tpu.memory_space<vmem>>, %arg6: memref<8x128xf32, #tpu.memory_space<vmem>>) attributes {dimension_semantics = [], scalar_prefetch = 0 : i64, scratch_operands = 0 : i64, tpu.core_type = #tpu.core_type<tc>} {
    %c0 = arith.constant 0 : index
    %0 = memref.load %arg0[%c0] : memref<8xi32, #tpu.memory_space<smem>>
    %1 = arith.index_cast %0 : i32 to index
    %c0_0 = arith.constant 0 : index
    %2 = vector.load %arg1[%1, %c0_0] : memref<50x128xf32, #tpu.memory_space<vmem>>, vector<1x128xf32>
    %c1 = arith.constant 1 : index
    %3 = memref.load %arg0[%c1] : memref<8xi32, #tpu.memory_space<smem>>
    %4 = arith.index_cast %3 : i32 to index
    %c0_1 = arith.constant 0 : index
    %5 = vector.load %arg1[%4, %c0_1] : memref<50x128xf32, #tpu.memory_space<vmem>>, vector<1x128xf32>
    %c2 = arith.constant 2 : index
    %6 = memref.load %arg0[%c2] : memref<8xi32, #tpu.memory_space<smem>>
    %7 = arith.index_cast %6 : i32 to index
    %c0_2 = arith.constant 0 : index
    %8 = vector.load %arg1[%7, %c0_2] : memref<50x128xf32, #tpu.memory_space<vmem>>, vector<1x128xf32>
    %c3 = arith.constant 3 : index
    %9 = memref.load %arg0[%c3] : memref<8xi32, #tpu.memory_space<smem>>
    %10 = arith.index_cast %9 : i32 to index
    %c0_3 = arith.constant 0 : index
    %11 = vector.load %arg1[%10, %c0_3] : memref<50x128xf32, #tpu.memory_space<vmem>>, vector<1x128xf32>
    %c4 = arith.constant 4 : index
    %12 = memref.load %arg0[%c4] : memref<8xi32, #tpu.memory_space<smem>>
    %13 = arith.index_cast %12 : i32 to index
    %c0_4 = arith.constant 0 : index
    %14 = vector.load %arg1[%13, %c0_4] : memref<50x128xf32, #tpu.memory_space<vmem>>, vector<1x128xf32>
    %c5 = arith.constant 5 : index
    %15 = memref.load %arg0[%c5] : memref<8xi32, #tpu.memory_space<smem>>
    %16 = arith.index_cast %15 : i32 to index
    %c0_5 = arith.constant 0 : index
    %17 = vector.load %arg1[%16, %c0_5] : memref<50x128xf32, #tpu.memory_space<vmem>>, vector<1x128xf32>
    %c6 = arith.constant 6 : index
    %18 = memref.load %arg0[%c6] : memref<8xi32, #tpu.memory_space<smem>>
    %19 = arith.index_cast %18 : i32 to index
    %c0_6 = arith.constant 0 : index
    %20 = vector.load %arg1[%19, %c0_6] : memref<50x128xf32, #tpu.memory_space<vmem>>, vector<1x128xf32>
    %c7 = arith.constant 7 : index
    %21 = memref.load %arg0[%c7] : memref<8xi32, #tpu.memory_space<smem>>
    %22 = arith.index_cast %21 : i32 to index
    %c0_7 = arith.constant 0 : index
    %23 = vector.load %arg1[%22, %c0_7] : memref<50x128xf32, #tpu.memory_space<vmem>>, vector<1x128xf32>
    %24 = tpu.concatenate %2, %5, %8, %11, %14, %17, %20, %23 in 0 : vector<1x128xf32>, vector<1x128xf32>, vector<1x128xf32>, vector<1x128xf32>, vector<1x128xf32>, vector<1x128xf32>, vector<1x128xf32>, vector<1x128xf32> -> vector<8x128xf32>
    %c0_8 = arith.constant 0 : index
    %c0_9 = arith.constant 0 : index
    %25 = vector.load %arg2[%c0_8, %c0_9] : memref<128x128xf32, #tpu.memory_space<vmem>>, vector<128x128xf32>
    %cst = arith.constant dense<0.000000e+00> : vector<8x128xf32>
    %26 = tpu.matmul %24, %25, %cst {dimension_numbers = #tpu.dot_dimension_numbers<[1], [0], [0], [1], [0, 0, 1, 1], [], []>} : vector<8x128xf32>, vector<128x128xf32>, vector<8x128xf32> -> vector<8x128xf32>
    %c0_10 = arith.constant 0 : index
    %c0_11 = arith.constant 0 : index
    %27 = vector.load %arg3[%c0_10, %c0_11] : memref<1x128xf32, #tpu.memory_space<vmem>>, vector<1x128xf32>
    %28 = vector.broadcast %27 : vector<1x128xf32> to vector<8x128xf32>
    %29 = arith.addf %26, %28 : vector<8x128xf32>
    %30 = arith.negf %29 : vector<8x128xf32>
    %31 = math.exp %30 : vector<8x128xf32>
    %cst_12 = arith.constant 1.000000e+00 : f32
    %32 = vector.broadcast %cst_12 : f32 to vector<8x128xf32>
    %33 = arith.addf %32, %31 : vector<8x128xf32>
    %34 = arith.divf %32, %33 : vector<8x128xf32>
    %35 = arith.mulf %29, %34 : vector<8x128xf32>
    %c0_13 = arith.constant 0 : index
    %c0_14 = arith.constant 0 : index
    %36 = vector.load %arg4[%c0_13, %c0_14] : memref<128x128xf32, #tpu.memory_space<vmem>>, vector<128x128xf32>
    %cst_15 = arith.constant dense<0.000000e+00> : vector<8x128xf32>
    %37 = tpu.matmul %35, %36, %cst_15 {dimension_numbers = #tpu.dot_dimension_numbers<[1], [0], [0], [1], [0, 0, 1, 1], [], []>} : vector<8x128xf32>, vector<128x128xf32>, vector<8x128xf32> -> vector<8x128xf32>
    %c0_16 = arith.constant 0 : index
    %c0_17 = arith.constant 0 : index
    %38 = vector.load %arg5[%c0_16, %c0_17] : memref<1x128xf32, #tpu.memory_space<vmem>>, vector<1x128xf32>
    %39 = vector.broadcast %38 : vector<1x128xf32> to vector<8x128xf32>
    %40 = arith.addf %37, %39 : vector<8x128xf32>
    %41 = arith.negf %40 : vector<8x128xf32>
    %42 = math.exp %41 : vector<8x128xf32>
    %cst_18 = arith.constant 1.000000e+00 : f32
    %43 = vector.broadcast %cst_18 : f32 to vector<8x128xf32>
    %44 = arith.addf %43, %42 : vector<8x128xf32>
    %45 = arith.divf %43, %44 : vector<8x128xf32>
    %46 = arith.mulf %40, %45 : vector<8x128xf32>
    %c0_19 = arith.constant 0 : index
    %c0_20 = arith.constant 0 : index
    %47 = vector.load %arg6[%c0_19, %c0_20] : memref<8x128xf32, #tpu.memory_space<vmem>>, vector<8x128xf32>
    tpu.vector_store %arg6[%c0_19, %c0_20], %46 {strides = array<i32>} : memref<8x128xf32, #tpu.memory_space<vmem>>, vector<8x128xf32>,
    return
  }
}

</mosaic_0001>

<llo_original>
// kernel: diffusion_embedding_forward.1
$region0: #{diffusion_embedding_forward.1}
  #allocation0 [shape = 'u32[]', space=smem, size = 0x4, offset = 0x4, fixed_abs, tag = 'smem constant byte address 0x4 - core index']
  #allocation1 [shape = 'u32[144,128]{1,0:T(1,128)}', space=vmem, size = 0x12000, scoped, tag = 'internal scratch']
  %s0 = inlined_call_operand.hbm [shape: s32[8], index: 0, kind: input, shape index: {}]
  %s1 = inlined_call_operand.hbm [shape: f32[50,128], index: 1, kind: input, shape index: {}]
  %s2 = inlined_call_operand.hbm [shape: f32[128,128], index: 2, kind: input, shape index: {}]
  %s3 = inlined_call_operand.vmem [shape: f32[1,128], index: 3, kind: input, shape index: {}]
  %s4 = inlined_call_operand.hbm [shape: f32[128,128], index: 4, kind: input, shape index: {}]
  %s5 = inlined_call_operand.vmem [shape: f32[1,128], index: 5, kind: input, shape index: {}]
  %s6 = inlined_call_operand.hbm [shape: f32[8,128], index: 6, kind: output, shape index: {}]
  %s7 = sld [smem:[#allocation0]]
  $region50: #{diffusion_embedding_forward.1} parent=0
    _
  %s9 = ssub.s32 1, %s7
  %s10 = scalar_select 0, %s9, %s7
  $region1: #{diffusion_embedding_forward.1} parent=0
    #allocation2 [shape = 'u8[512]{0}', space=smem, size = 0x200, scoped, tag = 'input window, operand 0, single buffered']
    #allocation3 [shape = 's32[1]{0}', space=sflag, size = 0x4, scoped, tag = 'scoped memory for diffusion_embedding_forward.1']
    #allocation4 [shape = 's32[1]{0}', space=sflag, size = 0x4, scoped, tag = 'scoped memory for diffusion_embedding_forward.1']
    #allocation5 [shape = 's32[1]{0}', space=sflag, size = 0x4, scoped, tag = 'scoped memory for diffusion_embedding_forward.1']
    #allocation6 [shape = 'u8[28672]{0}', space=vmem, size = 0x7000, scoped, tag = 'input window, operand 1, single buffered']
    #allocation7 [shape = 'u8[65536]{0}', space=vmem, size = 0x10000, scoped, tag = 'input window, operand 2, single buffered']
    #allocation8 [shape = 's32[1]{0}', space=sflag, size = 0x4, scoped, tag = 'scoped memory for diffusion_embedding_forward.1']
    #allocation9 [shape = 'u8[65536]{0}', space=vmem, size = 0x10000, scoped, tag = 'input window, operand 4, single buffered']
    #allocation10 [shape = 'u8[4096]{0}', space=vmem, size = 0x1000, scoped, tag = 'output window, operand 0, single buffered']
    %11 = vsyncpa [#allocation5], 0
    %12 = vsyncpa [#allocation3], 0
    %13 = vsyncpa [#allocation8], 0
    %14 = vsyncpa [#allocation4], 0
    // Predicated region
    $region2: #{diffusion_embedding_forward.1} parent=1 // pred_check
      _
    $region3: #{diffusion_embedding_forward.1} parent=1 // pred_check_branch
      %16 = sbr.rel (0) target = $region5
    $region4: #{diffusion_embedding_forward.1} parent=1 // pred_region
      %s18 = ssub.s32 16, 16
      %19 = vsyncadd [#allocation5], %s18
      %22 = dma.hbm_to_smem %s0, 16, [#allocation2], [#allocation5]
    $region5: #{diffusion_embedding_forward.1} parent=1 // pred_fallthru
      _
    // Predicated region
    $region6: #{diffusion_embedding_forward.1} parent=1 // pred_check
      _
    $region7: #{diffusion_embedding_forward.1} parent=1 // pred_check_branch
      %24 = sbr.rel (0) target = $region9
    $region8: #{diffusion_embedding_forward.1} parent=1 // pred_region
      %s26 = ssub.s32 896, 896
      %27 = vsyncadd [#allocation3], %s26
      %s28 = sshll.u32 [#allocation6], 4
      %s29 = int_to_ptr.vmem [resolvable:$true] %s28
      %34 = dma.hbm_to_vmem [thread:$0]  %s1, 896, %s29, [#allocation3], 128, 128, 8
    $region9: #{diffusion_embedding_forward.1} parent=1 // pred_fallthru
      _
    // Predicated region
    $region10: #{diffusion_embedding_forward.1} parent=1 // pred_check
      _
    $region11: #{diffusion_embedding_forward.1} parent=1 // pred_check_branch
      %36 = sbr.rel (0) target = $region13
    $region12: #{diffusion_embedding_forward.1} parent=1 // pred_region
      %s38 = ssub.s32 2048, 2048
      %39 = vsyncadd [#allocation8], %s38
      %s40 = sshll.u32 [#allocation7], 4
      %s41 = int_to_ptr.vmem [resolvable:$true] %s40
      %46 = dma.hbm_to_vmem [thread:$0]  %s2, 2048, %s41, [#allocation8], 128, 128, 8
    $region13: #{diffusion_embedding_forward.1} parent=1 // pred_fallthru
      _
    // Predicated region
    $region14: #{diffusion_embedding_forward.1} parent=1 // pred_check
      _
    $region15: #{diffusion_embedding_forward.1} parent=1 // pred_check_branch
      %48 = sbr.rel (0) target = $region17
    $region16: #{diffusion_embedding_forward.1} parent=1 // pred_region
      _
    $region17: #{diffusion_embedding_forward.1} parent=1 // pred_fallthru
      _
    // Predicated region
    $region18: #{diffusion_embedding_forward.1} parent=1 // pred_check
      _
    $region19: #{diffusion_embedding_forward.1} parent=1 // pred_check_branch
      %50 = sbr.rel (0) target = $region21
    $region20: #{diffusion_embedding_forward.1} parent=1 // pred_region
      %s52 = ssub.s32 2048, 2048
      %53 = vsyncadd [#allocation8], %s52
      %s54 = sshll.u32 [#allocation9], 4
      %s55 = int_to_ptr.vmem [resolvable:$true] %s54
      %60 = dma.hbm_to_vmem [thread:$0]  %s4, 2048, %s55, [#allocation8], 128, 128, 8
    $region21: #{diffusion_embedding_forward.1} parent=1 // pred_fallthru
      _
    // Predicated region
    $region22: #{diffusion_embedding_forward.1} parent=1 // pred_check
      _
    $region23: #{diffusion_embedding_forward.1} parent=1 // pred_check_branch
      %62 = sbr.rel (0) target = $region25
    $region24: #{diffusion_embedding_forward.1} parent=1 // pred_region
      _
    $region25: #{diffusion_embedding_forward.1} parent=1 // pred_fallthru
      _
    // Predicated region
    $region26: #{diffusion_embedding_forward.1} parent=1 // pred_check
      _
    $region27: #{diffusion_embedding_forward.1} parent=1 // pred_check_branch
      %64 = sbr.rel (0) target = $region29
    $region28: #{diffusion_embedding_forward.1} parent=1 // pred_region
      %65 = dma.done [#allocation5], 16
    $region29: #{diffusion_embedding_forward.1} parent=1 // pred_fallthru
      _
    // Predicated region
    $region30: #{diffusion_embedding_forward.1} parent=1 // pred_check
      _
    $region31: #{diffusion_embedding_forward.1} parent=1 // pred_check_branch
      %67 = sbr.rel (0) target = $region33
    $region32: #{diffusion_embedding_forward.1} parent=1 // pred_region
      %68 = dma.done [#allocation3], 896
    $region33: #{diffusion_embedding_forward.1} parent=1 // pred_fallthru
      _
    // Predicated region
    $region34: #{diffusion_embedding_forward.1} parent=1 // pred_check
      _
    $region35: #{diffusion_embedding_forward.1} parent=1 // pred_check_branch
      %70 = sbr.rel (0) target = $region37
    $region36: #{diffusion_embedding_forward.1} parent=1 // pred_region
      %71 = dma.done [#allocation8], 2048
    $region37: #{diffusion_embedding_forward.1} parent=1 // pred_fallthru
      _
    // Predicated region
    $region38: #{diffusion_embedding_forward.1} parent=1 // pred_check
      _
    $region39: #{diffusion_embedding_forward.1} parent=1 // pred_check_branch
      %73 = sbr.rel (0) target = $region41
    $region40: #{diffusion_embedding_forward.1} parent=1 // pred_region
      %74 = dma.done [#allocation8], 2048
    $region41: #{diffusion_embedding_forward.1} parent=1 // pred_fallthru
      _
    %75 = sfence
    %s76 = sld [smem:[#allocation2]]
    %s77 = scalar_lea.vmem [#allocation6], %s76
    %v78 = vld [vmem:[%s77] sm:$0x1]
    %s79 = sld [smem:[#allocation2 + $0x1]]
    %s80 = scalar_lea.vmem [#allocation6], %s79
    %v81 = vld [vmem:[%s80] sm:$0x1]
    %s82 = sld [smem:[#allocation2 + $0x2]]
    %s83 = scalar_lea.vmem [#allocation6], %s82
    %v84 = vld [vmem:[%s83] sm:$0x1]
    %s85 = sld [smem:[#allocation2 + $0x3]]
    %s86 = scalar_lea.vmem [#allocation6], %s85
    %v87 = vld [vmem:[%s86] sm:$0x1]
    %s88 = sld [smem:[#allocation2 + $0x4]]
    %s89 = scalar_lea.vmem [#allocation6], %s88
    %v90 = vld [vmem:[%s89] sm:$0x1]
    %s91 = sld [smem:[#allocation2 + $0x5]]
    %s92 = scalar_lea.vmem [#allocation6], %s91
    %v93 = vld [vmem:[%s92] sm:$0x1]
    %s94 = sld [smem:[#allocation2 + $0x6]]
    %s95 = scalar_lea.vmem [#allocation6], %s94
    %v96 = vld [vmem:[%s95] sm:$0x1]
    %s97 = sld [smem:[#allocation2 + $0x7]]
    %s98 = scalar_lea.vmem [#allocation6], %s97
    %v99 = vld [vmem:[%s98] sm:$0x1]
    %v101 = vrot.slane %v81, 7
    %v104 = vrot.slane %v84, 6
    %v107 = vrot.slane %v87, 5
    %v110 = vrot.slane %v90, 4
    %v113 = vrot.slane %v93, 3
    %v116 = vrot.slane %v96, 2
    %v119 = vrot.slane %v99, 1
    %vm121 = vcmask 1040384
    %v122 = vsel %vm121, %v78, %v101
    %vm123 = vcmask 1041408
    %v124 = vsel %vm123, %v122, %v104
    %vm125 = vcmask 1042432
    %v126 = vsel %vm125, %v124, %v107
    %vm127 = vcmask 1043456
    %v128 = vsel %vm127, %v126, %v110
    %vm129 = vcmask 1044480
    %v130 = vsel %vm129, %v128, %v113
    %vm131 = vcmask 1045504
    %v132 = vsel %vm131, %v130, %v116
    %vm133 = vcmask 1046528
    %v134 = vsel %vm133, %v132, %v119
    %v135 = vld [vmem:[#allocation7] sm:$0xff]
    %v136 = vld [vmem:[#allocation7 + $0x8] sm:$0xff]
    %v137 = vld [vmem:[#allocation7 + $0x10] sm:$0xff]
    %v138 = vld [vmem:[#allocation7 + $0x18] sm:$0xff]
    %v139 = vld [vmem:[#allocation7 + $0x20] sm:$0xff]
    %v140 = vld [vmem:[#allocation7 + $0x28] sm:$0xff]
    %v141 = vld [vmem:[#allocation7 + $0x30] sm:$0xff]
    %v142 = vld [vmem:[#allocation7 + $0x38] sm:$0xff]
    %v143 = vld [vmem:[#allocation7 + $0x40] sm:$0xff]
    %v144 = vld [vmem:[#allocation7 + $0x48] sm:$0xff]
    %v145 = vld [vmem:[#allocation7 + $0x50] sm:$0xff]
    %v146 = vld [vmem:[#allocation7 + $0x58] sm:$0xff]
    %v147 = vld [vmem:[#allocation7 + $0x60] sm:$0xff]
    %v148 = vld [vmem:[#allocation7 + $0x68] sm:$0xff]
    %v149 = vld [vmem:[#allocation7 + $0x70] sm:$0xff]
    %v150 = vld [vmem:[#allocation7 + $0x78] sm:$0xff]
    %v151 = vld [vmem:[%s3] sm:$0x1]
    %v153 = vlaneseq
    %v154 = vshrl.u32 %v153, 7
    %v155 = vsub.s32 0, %v154
    %v156 = vrot.slane %v151, %v155
    %158 = vmatprep.subr.mxu0 0.0
    %159 = vmatpush1.msra.mxu0 %v150
    %160 = vmatprep.subr.mxu0 0.0
    %161 = vmatpush1.msra.mxu0 %v149
    %162 = vmatprep.subr.mxu0 0.0
    %163 = vmatpush1.msra.mxu0 %v148
    %164 = vmatprep.subr.mxu0 0.0
    %165 = vmatpush1.msra.mxu0 %v147
    %166 = vmatprep.subr.mxu0 0.0
    %167 = vmatpush1.msra.mxu0 %v146
    %168 = vmatprep.subr.mxu0 0.0
    %169 = vmatpush1.msra.mxu0 %v145
    %170 = vmatprep.subr.mxu0 0.0
    %171 = vmatpush1.msra.mxu0 %v144
    %172 = vmatprep.subr.mxu0 0.0
    %173 = vmatpush1.msra.mxu0 %v143
    %174 = vmatprep.subr.mxu0 0.0
    %175 = vmatpush1.msra.mxu0 %v142
    %176 = vmatprep.subr.mxu0 0.0
    %177 = vmatpush1.msra.mxu0 %v141
    %178 = vmatprep.subr.mxu0 0.0
    %179 = vmatpush1.msra.mxu0 %v140
    %180 = vmatprep.subr.mxu0 0.0
    %181 = vmatpush1.msra.mxu0 %v139
    %182 = vmatprep.subr.mxu0 0.0
    %183 = vmatpush1.msra.mxu0 %v138
    %184 = vmatprep.subr.mxu0 0.0
    %185 = vmatpush1.msra.mxu0 %v137
    %186 = vmatprep.subr.mxu0 0.0
    %187 = vmatpush1.msra.mxu0 %v136
    %188 = vmatprep.subr.mxu0 0.0
    %189 = vmatpush1.msra.mxu0 %v135
    %190 = vmatprep.subr.mxu0 0.0
    %191 = vmatpush2.msra.mxu0 0.0
    %192 = vmatprep.subr.mxu0 0.0
    %193 = vmatpush2.msra.mxu0 0.0
    %194 = vmatprep.subr.mxu0 0.0
    %195 = vmatpush2.msra.mxu0 0.0
    %196 = vmatprep.subr.mxu0 0.0
    %197 = vmatpush2.msra.mxu0 0.0
    %198 = vmatprep.subr.mxu0 0.0
    %199 = vmatpush2.msra.mxu0 0.0
    %200 = vmatprep.subr.mxu0 0.0
    %201 = vmatpush2.msra.mxu0 0.0
    %202 = vmatprep.subr.mxu0 0.0
    %203 = vmatpush2.msra.mxu0 0.0
    %204 = vmatprep.subr.mxu0 0.0
    %205 = vmatpush2.msra.mxu0 0.0
    %206 = vmatprep.subr.mxu0 0.0
    %207 = vmatpush2.msra.mxu0 0.0
    %208 = vmatprep.subr.mxu0 0.0
    %209 = vmatpush2.msra.mxu0 0.0
    %210 = vmatprep.subr.mxu0 0.0
    %211 = vmatpush2.msra.mxu0 0.0
    %212 = vmatprep.subr.mxu0 0.0
    %213 = vmatpush2.msra.mxu0 0.0
    %214 = vmatprep.subr.mxu0 0.0
    %215 = vmatpush2.msra.mxu0 0.0
    %216 = vmatprep.subr.mxu0 0.0
    %217 = vmatpush2.msra.mxu0 0.0
    %218 = vmatprep.subr.mxu0 0.0
    %219 = vmatpush2.msra.mxu0 0.0
    %220 = vmatprep.subr.mxu0 0.0
    %221 = vmatpush2.msra.mxu0 0.0
    %222 = vmatprep.mubr.f32.mxu0 0.0
    %223 = vmatmul.mubr.f32.gmra.mxu0 %v134
    %v224 = vpop.f32.mrf.mxu0
    %v225 = vadd.f32 %v156, %v224
    %v226 = vpop.f32.mrf.mxu0
    %227 = vdwg.mxu0
    %v228 = vxor.u32 %v225, 2147483648
    %v229 = vmul.f32 %v228, 1.442695
    %v230 = vpow.pop %v229
    %v231 = vadd.f32 %v230, 1.0
    %v232 = vrcp.pop %v231
    %v233 = vmul.f32 1.0, %v232
    %v234 = vmul.f32 %v225, %v233
    %v235 = vld [vmem:[#allocation9] sm:$0xff]
    %v236 = vld [vmem:[#allocation9 + $0x8] sm:$0xff]
    %v237 = vld [vmem:[#allocation9 + $0x10] sm:$0xff]
    %v238 = vld [vmem:[#allocation9 + $0x18] sm:$0xff]
    %v239 = vld [vmem:[#allocation9 + $0x20] sm:$0xff]
    %v240 = vld [vmem:[#allocation9 + $0x28] sm:$0xff]
    %v241 = vld [vmem:[#allocation9 + $0x30] sm:$0xff]
    %v242 = vld [vmem:[#allocation9 + $0x38] sm:$0xff]
    %v243 = vld [vmem:[#allocation9 + $0x40] sm:$0xff]
    %v244 = vld [vmem:[#allocation9 + $0x48] sm:$0xff]
    %v245 = vld [vmem:[#allocation9 + $0x50] sm:$0xff]
    %v246 = vld [vmem:[#allocation9 + $0x58] sm:$0xff]
    %v247 = vld [vmem:[#allocation9 + $0x60] sm:$0xff]
    %v248 = vld [vmem:[#allocation9 + $0x68] sm:$0xff]
    %v249 = vld [vmem:[#allocation9 + $0x70] sm:$0xff]
    %v250 = vld [vmem:[#allocation9 + $0x78] sm:$0xff]
    %v251 = vld [vmem:[%s5] sm:$0x1]
    %v253 = vlaneseq
    %v254 = vshrl.u32 %v253, 7
    %v255 = vsub.s32 0, %v254
    %v256 = vrot.slane %v251, %v255
    %258 = vmatprep.subr.mxu0 0.0
    %259 = vmatpush1.msra.mxu0 %v250
    %260 = vmatprep.subr.mxu0 0.0
    %261 = vmatpush1.msra.mxu0 %v249
    %262 = vmatprep.subr.mxu0 0.0
    %263 = vmatpush1.msra.mxu0 %v248
    %264 = vmatprep.subr.mxu0 0.0
    %265 = vmatpush1.msra.mxu0 %v247
    %266 = vmatprep.subr.mxu0 0.0
    %267 = vmatpush1.msra.mxu0 %v246
    %268 = vmatprep.subr.mxu0 0.0
    %269 = vmatpush1.msra.mxu0 %v245
    %270 = vmatprep.subr.mxu0 0.0
    %271 = vmatpush1.msra.mxu0 %v244
    %272 = vmatprep.subr.mxu0 0.0
    %273 = vmatpush1.msra.mxu0 %v243
    %274 = vmatprep.subr.mxu0 0.0
    %275 = vmatpush1.msra.mxu0 %v242
    %276 = vmatprep.subr.mxu0 0.0
    %277 = vmatpush1.msra.mxu0 %v241
    %278 = vmatprep.subr.mxu0 0.0
    %279 = vmatpush1.msra.mxu0 %v240
    %280 = vmatprep.subr.mxu0 0.0
    %281 = vmatpush1.msra.mxu0 %v239
    %282 = vmatprep.subr.mxu0 0.0
    %283 = vmatpush1.msra.mxu0 %v238
    %284 = vmatprep.subr.mxu0 0.0
    %285 = vmatpush1.msra.mxu0 %v237
    %286 = vmatprep.subr.mxu0 0.0
    %287 = vmatpush1.msra.mxu0 %v236
    %288 = vmatprep.subr.mxu0 0.0
    %289 = vmatpush1.msra.mxu0 %v235
    %290 = vmatprep.subr.mxu0 0.0
    %291 = vmatpush2.msra.mxu0 0.0
    %292 = vmatprep.subr.mxu0 0.0
    %293 = vmatpush2.msra.mxu0 0.0
    %294 = vmatprep.subr.mxu0 0.0
    %295 = vmatpush2.msra.mxu0 0.0
    %296 = vmatprep.subr.mxu0 0.0
    %297 = vmatpush2.msra.mxu0 0.0
    %298 = vmatprep.subr.mxu0 0.0
    %299 = vmatpush2.msra.mxu0 0.0
    %300 = vmatprep.subr.mxu0 0.0
    %301 = vmatpush2.msra.mxu0 0.0
    %302 = vmatprep.subr.mxu0 0.0
    %303 = vmatpush2.msra.mxu0 0.0
    %304 = vmatprep.subr.mxu0 0.0
    %305 = vmatpush2.msra.mxu0 0.0
    %306 = vmatprep.subr.mxu0 0.0
    %307 = vmatpush2.msra.mxu0 0.0
    %308 = vmatprep.subr.mxu0 0.0
    %309 = vmatpush2.msra.mxu0 0.0
    %310 = vmatprep.subr.mxu0 0.0
    %311 = vmatpush2.msra.mxu0 0.0
    %312 = vmatprep.subr.mxu0 0.0
    %313 = vmatpush2.msra.mxu0 0.0
    %314 = vmatprep.subr.mxu0 0.0
    %315 = vmatpush2.msra.mxu0 0.0
    %316 = vmatprep.subr.mxu0 0.0
    %317 = vmatpush2.msra.mxu0 0.0
    %318 = vmatprep.subr.mxu0 0.0
    %319 = vmatpush2.msra.mxu0 0.0
    %320 = vmatprep.subr.mxu0 0.0
    %321 = vmatpush2.msra.mxu0 0.0
    %322 = vmatprep.mubr.f32.mxu0 0.0
    %323 = vmatmul.mubr.f32.gmra.mxu0 %v234
    %v324 = vpop.f32.mrf.mxu0
    %v325 = vadd.f32 %v256, %v324
    %v326 = vpop.f32.mrf.mxu0
    %327 = vdwg.mxu0
    %v328 = vxor.u32 %v325, 2147483648
    %v329 = vmul.f32 %v328, 1.442695
    %v330 = vpow.pop %v329
    %v331 = vadd.f32 %v330, 1.0
    %v332 = vrcp.pop %v331
    %v333 = vmul.f32 1.0, %v332
    %v334 = vmul.f32 %v325, %v333
    %335 = vst [vmem:[#allocation10] sm:$0xff] %v334
    // Predicated region
    $region42: #{diffusion_embedding_forward.1} parent=1 // pred_check
      _
    $region43: #{diffusion_embedding_forward.1} parent=1 // pred_check_branch
      %337 = sbr.rel (0) target = $region45
    $region44: #{diffusion_embedding_forward.1} parent=1 // pred_region
      %s339 = ssub.s32 128, 128
      %340 = vsyncadd [#allocation4], %s339
      %s342 = sshll.u32 [#allocation10], 4
      %s343 = int_to_ptr.vmem [resolvable:$true] %s342
      %345 = dma.vmem_to_hbm [thread:$0]  %s343, 128, %s6, [#allocation4]
    $region45: #{diffusion_embedding_forward.1} parent=1 // pred_fallthru
      _
    // Predicated region
    $region46: #{diffusion_embedding_forward.1} parent=1 // pred_check
      _
    $region47: #{diffusion_embedding_forward.1} parent=1 // pred_check_branch
      %347 = sbr.rel (0) target = $region49
    $region48: #{diffusion_embedding_forward.1} parent=1 // pred_region
      %348 = dma.done [#allocation4], 128
    $region49: #{diffusion_embedding_forward.1} parent=1 // pred_fallthru
      _
    %349 = vsyncpa [#allocation3], 1
    %350 = vsyncpa [#allocation8], 1
    %351 = vsyncpa [#allocation4], 1
    %352 = vsyncpa [#allocation5], 1

</llo_original>
